<compile_context>
chip_gen: v7x
topology: tpu7x:2x2x1
jax: 0.10.0
libtpu: 0.0.40
codegen_flags: <defaults>
</compile_context>

<pallas_src>
import jax
import jax.numpy as jnp
from jax.experimental import pallas as pl
from jax.experimental.pallas import tpu as pltpu


def _round_up(x: int, m: int) -> int:
    return ((x + m - 1) // m) * m


def reward_learner_kernel(x_ref, w1_ref, b1_ref, w2_ref, b2_ref, w3_ref, b3_ref, o_ref):
    # x tile: (TB, D_in) bf16; weights bf16; biases / w3 row f32.
    x = x_ref[...]
    # Layer 1: MXU bf16 matmul, f32 accumulate, bias + ReLU on VPU in f32.
    h1 = jnp.dot(x, w1_ref[...], preferred_element_type=jnp.float32) + b1_ref[...]
    h1 = jnp.maximum(h1, 0.0)
    # Layer 2: cast activations to bf16 for the MXU, accumulate in f32.
    h2 = jnp.dot(h1.astype(jnp.bfloat16), w2_ref[...],
                 preferred_element_type=jnp.float32) + b2_ref[...]
    h2 = jnp.maximum(h2, 0.0)
    # Layer 3 (N=1): VPU elementwise multiply + XLU row reduction instead of an
    # MXU matmul that would use 1 output lane out of 128/256.
    out = jnp.sum(h2 * w3_ref[...], axis=-1, keepdims=True) + b3_ref[...]
    o_ref[...] = out.astype(o_ref.dtype)                      # (TB, 1)


def reward_learner_forward(x, w1, b1, w2, b2, w3, b3, *, block_b: int = 512):
    """x: (B, C, H, W) or (B, D_in). Weights are (in, out); biases (1, out). Returns (B, 1)."""
    B = x.shape[0]
    x_flat = x.reshape(B, -1)                                 # nn.Flatten (row-major == torch)
    d_in = x_flat.shape[1]
    hid = w1.shape[1]

    # Stream the big operands as bf16; accumulation stays f32 inside the kernel.
    x_bf = x_flat.astype(jnp.bfloat16)
    w1_bf = w1.astype(jnp.bfloat16)
    w2_bf = w2.astype(jnp.bfloat16)
    w3_row = w3.reshape(1, hid).astype(jnp.float32)           # (1, hid) row for the VPU path
    b1_f = b1.astype(jnp.float32)
    b2_f = b2.astype(jnp.float32)
    b3_f = b3.reshape(1, 1).astype(jnp.float32)

    # Batch tile: MXU-aligned when B is large, padded to >=16 rows (bf16 sublane pack)
    # when B is tiny. Padded rows are computed and then sliced off.
    tb = min(block_b, _round_up(B, 16))
    b_pad = _round_up(B, tb)
    if b_pad != B:
        x_bf = jnp.pad(x_bf, ((0, b_pad - B), (0, 0)))

    out = pl.pallas_call(
        reward_learner_kernel,
        out_shape=jax.ShapeDtypeStruct((b_pad, 1), jnp.float32),
        grid=(b_pad // tb,),
        in_specs=[
            pl.BlockSpec((tb, d_in), lambda i: (i, 0)),       # x tile streams over batch
            pl.BlockSpec((d_in, hid), lambda i: (0, 0)),      # w1: VMEM-resident
            pl.BlockSpec((1, hid), lambda i: (0, 0)),         # b1
            pl.BlockSpec((hid, hid), lambda i: (0, 0)),       # w2
            pl.BlockSpec((1, hid), lambda i: (0, 0)),         # b2
            pl.BlockSpec((1, hid), lambda i: (0, 0)),         # w3 row
            pl.BlockSpec((1, 1), lambda i: (0, 0)),           # b3
        ],
        out_specs=pl.BlockSpec((tb, 1), lambda i: (i, 0)),
        compiler_params=pltpu.CompilerParams(
            dimension_semantics=("parallel",),                # batch axis: megacore-shardable
            vmem_limit_bytes=32 << 20,                        # ~4 MiB footprint + headroom; v7x-safe
        ),
    )(x_bf, w1_bf, b1_f, w2_bf, b2_f, w3_row, b3_f)
    return out[:B]


def init_params(key, input_dim=1024, hidden_dim=256):
    """Deterministic synthetic init matching nn.Linear (PyTorch (out,in) layout, transposed)."""
    ks = jax.random.split(key, 6)

    def linear(kw, kb, fan_in, fan_out):
        bound = 1.0 / jnp.sqrt(fan_in)
        w = jax.random.uniform(kw, (fan_out, fan_in), jnp.float32, -bound, bound)
        b = jax.random.uniform(kb, (fan_out,), jnp.float32, -bound, bound)
        return w.T, b.reshape(1, fan_out)                     # (in, out), (1, out)

    w1, b1 = linear(ks[0], ks[1], input_dim, hidden_dim)
    w2, b2 = linear(ks[2], ks[3], hidden_dim, hidden_dim)
    w3, b3 = linear(ks[4], ks[5], hidden_dim, 1)
    return w1, b1, w2, b2, w3, b3


def reference_forward(x, w1, b1, w2, b2, w3, b3):
    xf = x.reshape(x.shape[0], -1).astype(jnp.float32)
    h1 = jnp.maximum(xf @ w1 + b1, 0.0)
    h2 = jnp.maximum(h1 @ w2 + b2, 0.0)
    return h2 @ w3 + b3


if __name__ == "__main__":
    key = jax.random.PRNGKey(0)
    kx, kx2, kp = jax.random.split(key, 3)

    # Small example: (B, C, H, W) with C*H*W == input_dim == 1024.
    B, C, H, W = 2, 4, 16, 16
    input_dim, hidden_dim = C * H * W, 256

    x = jax.random.normal(kx, (B, C, H, W), dtype=jnp.float32)
    params = init_params(kp, input_dim=input_dim, hidden_dim=hidden_dim)

    out = reward_learner_forward(x, *params)
    out = jax.block_until_ready(out)
    ref = reference_forward(x, *params)
    assert out.shape == (B, 1)
    # bf16 input/weight streaming with f32 accumulation: loose tolerance vs f32 ref.
    assert jnp.allclose(out, ref, atol=5e-2, rtol=5e-2)

    # Second check: larger batch exercising the multi-tile grid + padding path.
    B2 = 600
    x2 = jax.random.normal(kx2, (B2, C, H, W), dtype=jnp.float32)
    out2 = jax.block_until_ready(reward_learner_forward(x2, *params))
    ref2 = reference_forward(x2, *params)
    assert out2.shape == (B2, 1)
    assert jnp.allclose(out2, ref2, atol=5e-2, rtol=5e-2)

    print("KERNEL_OK")
</pallas_src>

<mosaic_0001>
module attributes {stable_mosaic.version = 11 : i64} {
  func.func @reward_learner_kernel(%arg0: i32, %arg1: memref<16x1024xbf16, #tpu.memory_space<vmem>>, %arg2: memref<1024x256xbf16, #tpu.memory_space<vmem>>, %arg3: memref<1x256xf32, #tpu.memory_space<vmem>>, %arg4: memref<256x256xbf16, #tpu.memory_space<vmem>>, %arg5: memref<1x256xf32, #tpu.memory_space<vmem>>, %arg6: memref<1x256xf32, #tpu.memory_space<vmem>>, %arg7: memref<1x1xf32, #tpu.memory_space<vmem>>, %arg8: memref<16x1xf32, #tpu.memory_space<vmem>>) attributes {dimension_semantics = [#tpu.dimension_semantics<parallel>], iteration_bounds = array<i64: 1>, scalar_prefetch = 0 : i64, scratch_operands = 0 : i64, tpu.core_type = #tpu.core_type<tc>, window_params = [{transform_indices = @transform_0, window_bounds = array<i64: 16, 1024>}, {pipeline_mode = #tpu.pipeline_mode<synchronous>, transform_indices = @transform_1, window_bounds = array<i64: 1024, 256>}, {pipeline_mode = #tpu.pipeline_mode<synchronous>, transform_indices = @transform_2, window_bounds = array<i64: 1, 256>}, {pipeline_mode = #tpu.pipeline_mode<synchronous>, transform_indices = @transform_3, window_bounds = array<i64: 256, 256>}, {pipeline_mode = #tpu.pipeline_mode<synchronous>, transform_indices = @transform_4, window_bounds = array<i64: 1, 256>}, {pipeline_mode = #tpu.pipeline_mode<synchronous>, transform_indices = @transform_5, window_bounds = array<i64: 1, 256>}, {pipeline_mode = #tpu.pipeline_mode<synchronous>, transform_indices = @transform_6, window_bounds = array<i64: 1, 1>}, {transform_indices = @transform_7, window_bounds = array<i64: 16, 1>}]} {
    %c0 = arith.constant 0 : index
    %c0_0 = arith.constant 0 : index
    %0 = vector.load %arg1[%c0, %c0_0] : memref<16x1024xbf16, #tpu.memory_space<vmem>>, vector<16x1024xbf16>
    %c0_1 = arith.constant 0 : index
    %c0_2 = arith.constant 0 : index
    %1 = vector.load %arg2[%c0_1, %c0_2] : memref<1024x256xbf16, #tpu.memory_space<vmem>>, vector<1024x256xbf16>
    %cst = arith.constant dense<0.000000e+00> : vector<16x256xf32>
    %2 = tpu.matmul %0, %1, %cst {dimension_numbers = #tpu.dot_dimension_numbers<[1], [0], [0], [1], [0, 0, 1, 1], [], []>} : vector<16x1024xbf16>, vector<1024x256xbf16>, vector<16x256xf32> -> vector<16x256xf32>
    %c0_3 = arith.constant 0 : index
    %c0_4 = arith.constant 0 : index
    %3 = vector.load %arg3[%c0_3, %c0_4] : memref<1x256xf32, #tpu.memory_space<vmem>>, vector<1x256xf32>
    %4 = vector.broadcast %3 : vector<1x256xf32> to vector<16x256xf32>
    %5 = arith.addf %2, %4 : vector<16x256xf32>
    %cst_5 = arith.constant 0.000000e+00 : f32
    %6 = vector.broadcast %cst_5 : f32 to vector<16x256xf32>
    %7 = arith.maximumf %5, %6 : vector<16x256xf32>
    %8 = arith.truncf %7 : vector<16x256xf32> to vector<16x256xbf16>
    %c0_6 = arith.constant 0 : index
    %c0_7 = arith.constant 0 : index
    %9 = vector.load %arg4[%c0_6, %c0_7] : memref<256x256xbf16, #tpu.memory_space<vmem>>, vector<256x256xbf16>
    %cst_8 = arith.constant dense<0.000000e+00> : vector<16x256xf32>
    %10 = tpu.matmul %8, %9, %cst_8 {dimension_numbers = #tpu.dot_dimension_numbers<[1], [0], [0], [1], [0, 0, 1, 1], [], []>} : vector<16x256xbf16>, vector<256x256xbf16>, vector<16x256xf32> -> vector<16x256xf32>
    %c0_9 = arith.constant 0 : index
    %c0_10 = arith.constant 0 : index
    %11 = vector.load %arg5[%c0_9, %c0_10] : memref<1x256xf32, #tpu.memory_space<vmem>>, vector<1x256xf32>
    %12 = vector.broadcast %11 : vector<1x256xf32> to vector<16x256xf32>
    %13 = arith.addf %10, %12 : vector<16x256xf32>
    %cst_11 = arith.constant 0.000000e+00 : f32
    %14 = vector.broadcast %cst_11 : f32 to vector<16x256xf32>
    %15 = arith.maximumf %13, %14 : vector<16x256xf32>
    %c0_12 = arith.constant 0 : index
    %c0_13 = arith.constant 0 : index
    %16 = vector.load %arg6[%c0_12, %c0_13] : memref<1x256xf32, #tpu.memory_space<vmem>>, vector<1x256xf32>
    %17 = vector.broadcast %16 : vector<1x256xf32> to vector<16x256xf32>
    %18 = arith.mulf %15, %17 : vector<16x256xf32>
    %cst_14 = arith.constant dense<0.000000e+00> : vector<16xf32>
    %19 = vector.multi_reduction <add>, %18, %cst_14 [1] : vector<16x256xf32> to vector<16xf32>
    %20 = vector.shape_cast %19 : vector<16xf32> to vector<16x1xf32>
    %c0_15 = arith.constant 0 : index
    %c0_16 = arith.constant 0 : index
    %21 = vector.load %arg7[%c0_15, %c0_16] : memref<1x1xf32, #tpu.memory_space<vmem>>, vector<1x1xf32>
    %22 = vector.broadcast %21 : vector<1x1xf32> to vector<16x1xf32>
    %23 = arith.addf %20, %22 : vector<16x1xf32>
    %c0_17 = arith.constant 0 : index
    %c0_18 = arith.constant 0 : index
    %24 = vector.load %arg8[%c0_17, %c0_18] : memref<16x1xf32, #tpu.memory_space<vmem>>, vector<16x1xf32>
    tpu.vector_store %arg8[%c0_17, %c0_18], %23 {strides = array<i32>} : memref<16x1xf32, #tpu.memory_space<vmem>>, vector<16x1xf32>,
    return
  }
  func.func @transform_0(%arg0: i32) -> (i32, i32) {
    %c0_i32 = arith.constant 0 : i32
    %c0_i32_0 = arith.constant 0 : i32
    return %arg0, %c0_i32 : i32, i32
  }
  func.func @transform_1(%arg0: i32) -> (i32, i32) {
    %c0_i32 = arith.constant 0 : i32
    %c0_i32_0 = arith.constant 0 : i32
    %c0_i32_1 = arith.constant 0 : i32
    return %c0_i32, %c0_i32_0 : i32, i32
  }
  func.func @transform_2(%arg0: i32) -> (i32, i32) {
    %c0_i32 = arith.constant 0 : i32
    %c0_i32_0 = arith.constant 0 : i32
    %c0_i32_1 = arith.constant 0 : i32
    return %c0_i32, %c0_i32_0 : i32, i32
  }
  func.func @transform_3(%arg0: i32) -> (i32, i32) {
    %c0_i32 = arith.constant 0 : i32
    %c0_i32_0 = arith.constant 0 : i32
    %c0_i32_1 = arith.constant 0 : i32
    return %c0_i32, %c0_i32_0 : i32, i32
  }
  func.func @transform_4(%arg0: i32) -> (i32, i32) {
    %c0_i32 = arith.constant 0 : i32
    %c0_i32_0 = arith.constant 0 : i32
    %c0_i32_1 = arith.constant 0 : i32
    return %c0_i32, %c0_i32_0 : i32, i32
  }
  func.func @transform_5(%arg0: i32) -> (i32, i32) {
    %c0_i32 = arith.constant 0 : i32
    %c0_i32_0 = arith.constant 0 : i32
    %c0_i32_1 = arith.constant 0 : i32
    return %c0_i32, %c0_i32_0 : i32, i32
  }
  func.func @transform_6(%arg0: i32) -> (i32, i32) {
    %c0_i32 = arith.constant 0 : i32
    %c0_i32_0 = arith.constant 0 : i32
    %c0_i32_1 = arith.constant 0 : i32
    return %c0_i32, %c0_i32_0 : i32, i32
  }
  func.func @transform_7(%arg0: i32) -> (i32, i32) {
    %c0_i32 = arith.constant 0 : i32
    %c0_i32_0 = arith.constant 0 : i32
    return %arg0, %c0_i32 : i32, i32
  }
}

</mosaic_0001>

<llo_original>
// kernel: tpu_custom_call.1
$region0: #{tpu_custom_call.1}
  #allocation0 [shape = 'u32[]', space=smem, size = 0x4, offset = 0x4, fixed_abs, tag = 'smem constant byte address 0x4 - core index']
  #allocation1 [shape = 'u32[144,128]{1,0:T(1,128)}', space=vmem, size = 0x12000, scoped, tag = 'internal scratch']
  #allocation2 [shape = 'f32[1,1]{1,0:T(1,128)S(1)}', space=vmem, size = 0x200, scoped, tag = 'scoped memory for tpu_custom_call.1']
  %s0 = inlined_call_operand.hbm [shape: bf16[16,1024], index: 0, kind: input, shape index: {}]
  %s1 = inlined_call_operand.hbm [shape: bf16[1024,256], index: 1, kind: input, shape index: {}]
  %s2 = inlined_call_operand.vmem [shape: f32[1,256], index: 2, kind: input, shape index: {}]
  %s3 = inlined_call_operand.hbm [shape: bf16[256,256], index: 3, kind: input, shape index: {}]
  %s4 = inlined_call_operand.vmem [shape: f32[1,256], index: 4, kind: input, shape index: {}]
  %s5 = inlined_call_operand.vmem [shape: f32[1,256], index: 5, kind: input, shape index: {}]
  %s6 = inlined_call_operand.<no memory space> [shape: f32[1,1], index: 6, kind: input, shape index: {}]
  %s7 = inlined_call_operand.vmem [shape: f32[16,1], index: 7, kind: output, shape index: {}]
  %s8 = sld [smem:[#allocation0]]
  $region50: #{tpu_custom_call.1} parent=0
    _
  %s10 = ssub.s32 1, %s8
  %s11 = scalar_select 0, %s10, %s8
  %v12 = vstv %s6
  %13 = vst [vmem:[#allocation2] sm:$0x1] %v12
  $region1: #{tpu_custom_call.1} parent=0
    #allocation3 [shape = 'u8[32768]{0}', space=vmem, size = 0x8000, scoped, tag = 'input window, operand 0, single buffered']
    #allocation4 [shape = 's32[1]{0}', space=sflag, size = 0x4, scoped, tag = 'scoped memory for tpu_custom_call.1']
    #allocation5 [shape = 'u8[524288]{0}', space=vmem, size = 0x80000, scoped, tag = 'input window, operand 1, single buffered']
    #allocation6 [shape = 's32[1]{0}', space=sflag, size = 0x4, scoped, tag = 'scoped memory for tpu_custom_call.1']
    #allocation7 [shape = 'u8[131072]{0}', space=vmem, size = 0x20000, scoped, tag = 'input window, operand 3, single buffered']
    %14 = vsyncpa [#allocation4], 0
    %15 = vsyncpa [#allocation6], 0
    // Predicated region
    $region2: #{tpu_custom_call.1} parent=1 // pred_check
      _
    $region3: #{tpu_custom_call.1} parent=1 // pred_check_branch
      %17 = sbr.rel (0) target = $region5
    $region4: #{tpu_custom_call.1} parent=1 // pred_region
      %s19 = ssub.s32 1024, 1024
      %20 = vsyncadd [#allocation4], %s19
      %s21 = sshll.u32 [#allocation3], 4
      %s22 = int_to_ptr.vmem [resolvable:$true] %s21
      %27 = dma.hbm_to_vmem [thread:$0]  %s0, 1024, %s22, [#allocation4], 512, 512, 32
    $region5: #{tpu_custom_call.1} parent=1 // pred_fallthru
      _
    // Predicated region
    $region6: #{tpu_custom_call.1} parent=1 // pred_check
      _
    $region7: #{tpu_custom_call.1} parent=1 // pred_check_branch
      %29 = sbr.rel (0) target = $region9
    $region8: #{tpu_custom_call.1} parent=1 // pred_region
      %s31 = ssub.s32 16384, 16384
      %32 = vsyncadd [#allocation6], %s31
      %s33 = sshll.u32 [#allocation5], 4
      %s34 = int_to_ptr.vmem [resolvable:$true] %s33
      %39 = dma.hbm_to_vmem [thread:$0]  %s1, 16384, %s34, [#allocation6], 128, 128, 8
    $region9: #{tpu_custom_call.1} parent=1 // pred_fallthru
      _
    // Predicated region
    $region10: #{tpu_custom_call.1} parent=1 // pred_check
      _
    $region11: #{tpu_custom_call.1} parent=1 // pred_check_branch
      %41 = sbr.rel (0) target = $region13
    $region12: #{tpu_custom_call.1} parent=1 // pred_region
      _
    $region13: #{tpu_custom_call.1} parent=1 // pred_fallthru
      _
    // Predicated region
    $region14: #{tpu_custom_call.1} parent=1 // pred_check
      _
    $region15: #{tpu_custom_call.1} parent=1 // pred_check_branch
      %43 = sbr.rel (0) target = $region17
    $region16: #{tpu_custom_call.1} parent=1 // pred_region
      %s45 = ssub.s32 4096, 4096
      %46 = vsyncadd [#allocation6], %s45
      %s47 = sshll.u32 [#allocation7], 4
      %s48 = int_to_ptr.vmem [resolvable:$true] %s47
      %53 = dma.hbm_to_vmem [thread:$0]  %s3, 4096, %s48, [#allocation6], 128, 128, 8
    $region17: #{tpu_custom_call.1} parent=1 // pred_fallthru
      _
    // Predicated region
    $region18: #{tpu_custom_call.1} parent=1 // pred_check
      _
    $region19: #{tpu_custom_call.1} parent=1 // pred_check_branch
      %55 = sbr.rel (0) target = $region21
    $region20: #{tpu_custom_call.1} parent=1 // pred_region
      _
    $region21: #{tpu_custom_call.1} parent=1 // pred_fallthru
      _
    // Predicated region
    $region22: #{tpu_custom_call.1} parent=1 // pred_check
      _
    $region23: #{tpu_custom_call.1} parent=1 // pred_check_branch
      %57 = sbr.rel (0) target = $region25
    $region24: #{tpu_custom_call.1} parent=1 // pred_region
      _
    $region25: #{tpu_custom_call.1} parent=1 // pred_fallthru
      _
    // Predicated region
    $region26: #{tpu_custom_call.1} parent=1 // pred_check
      _
    $region27: #{tpu_custom_call.1} parent=1 // pred_check_branch
      %59 = sbr.rel (0) target = $region29
    $region28: #{tpu_custom_call.1} parent=1 // pred_region
      _
    $region29: #{tpu_custom_call.1} parent=1 // pred_fallthru
      _
    // Predicated region
    $region30: #{tpu_custom_call.1} parent=1 // pred_check
      _
    $region31: #{tpu_custom_call.1} parent=1 // pred_check_branch
      %61 = sbr.rel (0) target = $region33
    $region32: #{tpu_custom_call.1} parent=1 // pred_region
      %62 = dma.done [#allocation4], 1024
    $region33: #{tpu_custom_call.1} parent=1 // pred_fallthru
      _
    // Predicated region
    $region34: #{tpu_custom_call.1} parent=1 // pred_check
      _
    $region35: #{tpu_custom_call.1} parent=1 // pred_check_branch
      %64 = sbr.rel (0) target = $region37
    $region36: #{tpu_custom_call.1} parent=1 // pred_region
      %65 = dma.done [#allocation6], 16384
    $region37: #{tpu_custom_call.1} parent=1 // pred_fallthru
      _
    // Predicated region
    $region38: #{tpu_custom_call.1} parent=1 // pred_check
      _
    $region39: #{tpu_custom_call.1} parent=1 // pred_check_branch
      %67 = sbr.rel (0) target = $region41
    $region40: #{tpu_custom_call.1} parent=1 // pred_region
      %68 = dma.done [#allocation6], 4096
    $region41: #{tpu_custom_call.1} parent=1 // pred_fallthru
      _
    %v69 = vld [vmem:[#allocation3] sm:$0xff]
    %v70 = vld [vmem:[#allocation3 + $0x8] sm:$0xff]
    %v71 = vld [vmem:[#allocation3 + $0x10] sm:$0xff]
    %v72 = vld [vmem:[#allocation3 + $0x18] sm:$0xff]
    %v73 = vld [vmem:[#allocation3 + $0x20] sm:$0xff]
    %v74 = vld [vmem:[#allocation3 + $0x28] sm:$0xff]
    %v75 = vld [vmem:[#allocation3 + $0x30] sm:$0xff]
    %v76 = vld [vmem:[#allocation3 + $0x38] sm:$0xff]
    %v77 = vld [vmem:[#allocation5] sm:$0xff]
    %v78 = vld [vmem:[#allocation5 + $0x8] sm:$0xff]
    %v79 = vld [vmem:[#allocation5 + $0x10] sm:$0xff]
    %v80 = vld [vmem:[#allocation5 + $0x18] sm:$0xff]
    %v81 = vld [vmem:[#allocation5 + $0x20] sm:$0xff]
    %v82 = vld [vmem:[#allocation5 + $0x28] sm:$0xff]
    %v83 = vld [vmem:[#allocation5 + $0x30] sm:$0xff]
    %v84 = vld [vmem:[#allocation5 + $0x38] sm:$0xff]
    %v85 = vld [vmem:[#allocation5 + $0x40] sm:$0xff]
    %v86 = vld [vmem:[#allocation5 + $0x48] sm:$0xff]
    %v87 = vld [vmem:[#allocation5 + $0x50] sm:$0xff]
    %v88 = vld [vmem:[#allocation5 + $0x58] sm:$0xff]
    %v89 = vld [vmem:[#allocation5 + $0x60] sm:$0xff]
    %v90 = vld [vmem:[#allocation5 + $0x68] sm:$0xff]
    %v91 = vld [vmem:[#allocation5 + $0x70] sm:$0xff]
    %v92 = vld [vmem:[#allocation5 + $0x78] sm:$0xff]
    %v93 = vld [vmem:[#allocation5 + $0x80] sm:$0xff]
    %v94 = vld [vmem:[#allocation5 + $0x88] sm:$0xff]
    %v95 = vld [vmem:[#allocation5 + $0x90] sm:$0xff]
    %v96 = vld [vmem:[#allocation5 + $0x98] sm:$0xff]
    %v97 = vld [vmem:[#allocation5 + $0xa0] sm:$0xff]
    %v98 = vld [vmem:[#allocation5 + $0xa8] sm:$0xff]
    %v99 = vld [vmem:[#allocation5 + $0xb0] sm:$0xff]
    %v100 = vld [vmem:[#allocation5 + $0xb8] sm:$0xff]
    %v101 = vld [vmem:[#allocation5 + $0xc0] sm:$0xff]
    %v102 = vld [vmem:[#allocation5 + $0xc8] sm:$0xff]
    %v103 = vld [vmem:[#allocation5 + $0xd0] sm:$0xff]
    %v104 = vld [vmem:[#allocation5 + $0xd8] sm:$0xff]
    %v105 = vld [vmem:[#allocation5 + $0xe0] sm:$0xff]
    %v106 = vld [vmem:[#allocation5 + $0xe8] sm:$0xff]
    %v107 = vld [vmem:[#allocation5 + $0xf0] sm:$0xff]
    %v108 = vld [vmem:[#allocation5 + $0xf8] sm:$0xff]
    %v109 = vld [vmem:[#allocation5 + $0x100] sm:$0xff]
    %v110 = vld [vmem:[#allocation5 + $0x108] sm:$0xff]
    %v111 = vld [vmem:[#allocation5 + $0x110] sm:$0xff]
    %v112 = vld [vmem:[#allocation5 + $0x118] sm:$0xff]
    %v113 = vld [vmem:[#allocation5 + $0x120] sm:$0xff]
    %v114 = vld [vmem:[#allocation5 + $0x128] sm:$0xff]
    %v115 = vld [vmem:[#allocation5 + $0x130] sm:$0xff]
    %v116 = vld [vmem:[#allocation5 + $0x138] sm:$0xff]
    %v117 = vld [vmem:[#allocation5 + $0x140] sm:$0xff]
    %v118 = vld [vmem:[#allocation5 + $0x148] sm:$0xff]
    %v119 = vld [vmem:[#allocation5 + $0x150] sm:$0xff]
    %v120 = vld [vmem:[#allocation5 + $0x158] sm:$0xff]
    %v121 = vld [vmem:[#allocation5 + $0x160] sm:$0xff]
    %v122 = vld [vmem:[#allocation5 + $0x168] sm:$0xff]
    %v123 = vld [vmem:[#allocation5 + $0x170] sm:$0xff]
    %v124 = vld [vmem:[#allocation5 + $0x178] sm:$0xff]
    %v125 = vld [vmem:[#allocation5 + $0x180] sm:$0xff]
    %v126 = vld [vmem:[#allocation5 + $0x188] sm:$0xff]
    %v127 = vld [vmem:[#allocation5 + $0x190] sm:$0xff]
    %v128 = vld [vmem:[#allocation5 + $0x198] sm:$0xff]
    %v129 = vld [vmem:[#allocation5 + $0x1a0] sm:$0xff]
    %v130 = vld [vmem:[#allocation5 + $0x1a8] sm:$0xff]
    %v131 = vld [vmem:[#allocation5 + $0x1b0] sm:$0xff]
    %v132 = vld [vmem:[#allocation5 + $0x1b8] sm:$0xff]
    %v133 = vld [vmem:[#allocation5 + $0x1c0] sm:$0xff]
    %v134 = vld [vmem:[#allocation5 + $0x1c8] sm:$0xff]
    %v135 = vld [vmem:[#allocation5 + $0x1d0] sm:$0xff]
    %v136 = vld [vmem:[#allocation5 + $0x1d8] sm:$0xff]
    %v137 = vld [vmem:[#allocation5 + $0x1e0] sm:$0xff]
    %v138 = vld [vmem:[#allocation5 + $0x1e8] sm:$0xff]
    %v139 = vld [vmem:[#allocation5 + $0x1f0] sm:$0xff]
    %v140 = vld [vmem:[#allocation5 + $0x1f8] sm:$0xff]
    %v141 = vld [vmem:[#allocation5 + $0x200] sm:$0xff]
    %v142 = vld [vmem:[#allocation5 + $0x208] sm:$0xff]
    %v143 = vld [vmem:[#allocation5 + $0x210] sm:$0xff]
    %v144 = vld [vmem:[#allocation5 + $0x218] sm:$0xff]
    %v145 = vld [vmem:[#allocation5 + $0x220] sm:$0xff]
    %v146 = vld [vmem:[#allocation5 + $0x228] sm:$0xff]
    %v147 = vld [vmem:[#allocation5 + $0x230] sm:$0xff]
    %v148 = vld [vmem:[#allocation5 + $0x238] sm:$0xff]
    %v149 = vld [vmem:[#allocation5 + $0x240] sm:$0xff]
    %v150 = vld [vmem:[#allocation5 + $0x248] sm:$0xff]
    %v151 = vld [vmem:[#allocation5 + $0x250] sm:$0xff]
    %v152 = vld [vmem:[#allocation5 + $0x258] sm:$0xff]
    %v153 = vld [vmem:[#allocation5 + $0x260] sm:$0xff]
    %v154 = vld [vmem:[#allocation5 + $0x268] sm:$0xff]
    %v155 = vld [vmem:[#allocation5 + $0x270] sm:$0xff]
    %v156 = vld [vmem:[#allocation5 + $0x278] sm:$0xff]
    %v157 = vld [vmem:[#allocation5 + $0x280] sm:$0xff]
    %v158 = vld [vmem:[#allocation5 + $0x288] sm:$0xff]
    %v159 = vld [vmem:[#allocation5 + $0x290] sm:$0xff]
    %v160 = vld [vmem:[#allocation5 + $0x298] sm:$0xff]
    %v161 = vld [vmem:[#allocation5 + $0x2a0] sm:$0xff]
    %v162 = vld [vmem:[#allocation5 + $0x2a8] sm:$0xff]
    %v163 = vld [vmem:[#allocation5 + $0x2b0] sm:$0xff]
    %v164 = vld [vmem:[#allocation5 + $0x2b8] sm:$0xff]
    %v165 = vld [vmem:[#allocation5 + $0x2c0] sm:$0xff]
    %v166 = vld [vmem:[#allocation5 + $0x2c8] sm:$0xff]
    %v167 = vld [vmem:[#allocation5 + $0x2d0] sm:$0xff]
    %v168 = vld [vmem:[#allocation5 + $0x2d8] sm:$0xff]
    %v169 = vld [vmem:[#allocation5 + $0x2e0] sm:$0xff]
    %v170 = vld [vmem:[#allocation5 + $0x2e8] sm:$0xff]
    %v171 = vld [vmem:[#allocation5 + $0x2f0] sm:$0xff]
    %v172 = vld [vmem:[#allocation5 + $0x2f8] sm:$0xff]
    %v173 = vld [vmem:[#allocation5 + $0x300] sm:$0xff]
    %v174 = vld [vmem:[#allocation5 + $0x308] sm:$0xff]
    %v175 = vld [vmem:[#allocation5 + $0x310] sm:$0xff]
    %v176 = vld [vmem:[#allocation5 + $0x318] sm:$0xff]
    %v177 = vld [vmem:[#allocation5 + $0x320] sm:$0xff]
    %v178 = vld [vmem:[#allocation5 + $0x328] sm:$0xff]
    %v179 = vld [vmem:[#allocation5 + $0x330] sm:$0xff]
    %v180 = vld [vmem:[#allocation5 + $0x338] sm:$0xff]
    %v181 = vld [vmem:[#allocation5 + $0x340] sm:$0xff]
    %v182 = vld [vmem:[#allocation5 + $0x348] sm:$0xff]
    %v183 = vld [vmem:[#allocation5 + $0x350] sm:$0xff]
    %v184 = vld [vmem:[#allocation5 + $0x358] sm:$0xff]
    %v185 = vld [vmem:[#allocation5 + $0x360] sm:$0xff]
    %v186 = vld [vmem:[#allocation5 + $0x368] sm:$0xff]
    %v187 = vld [vmem:[#allocation5 + $0x370] sm:$0xff]
    %v188 = vld [vmem:[#allocation5 + $0x378] sm:$0xff]
    %v189 = vld [vmem:[#allocation5 + $0x380] sm:$0xff]
    %v190 = vld [vmem:[#allocation5 + $0x388] sm:$0xff]
    %v191 = vld [vmem:[#allocation5 + $0x390] sm:$0xff]
    %v192 = vld [vmem:[#allocation5 + $0x398] sm:$0xff]
    %v193 = vld [vmem:[#allocation5 + $0x3a0] sm:$0xff]
    %v194 = vld [vmem:[#allocation5 + $0x3a8] sm:$0xff]
    %v195 = vld [vmem:[#allocation5 + $0x3b0] sm:$0xff]
    %v196 = vld [vmem:[#allocation5 + $0x3b8] sm:$0xff]
    %v197 = vld [vmem:[#allocation5 + $0x3c0] sm:$0xff]
    %v198 = vld [vmem:[#allocation5 + $0x3c8] sm:$0xff]
    %v199 = vld [vmem:[#allocation5 + $0x3d0] sm:$0xff]
    %v200 = vld [vmem:[#allocation5 + $0x3d8] sm:$0xff]
    %v201 = vld [vmem:[#allocation5 + $0x3e0] sm:$0xff]
    %v202 = vld [vmem:[#allocation5 + $0x3e8] sm:$0xff]
    %v203 = vld [vmem:[#allocation5 + $0x3f0] sm:$0xff]
    %v204 = vld [vmem:[#allocation5 + $0x3f8] sm:$0xff]
    %v205 = vld [vmem:[%s2] sm:$0x3]
    %v207 = vlaneseq
    %v208 = vshrl.u32 %v207, 7
    %v209 = vsub.s32 0, %v208
    %v210 = vrot.slane %v205, %v209
    %v211 = vlaneseq
    %v212 = vshrl.u32 %v211, 7
    %v213 = vsub.s32 1, %v212
    %v214 = vrot.slane %v205, %v213
    %v225 = vunpack.c.l.b16 %v69
    %v226 = vunpack.c.h.b16 %v69
    %v227 = vunpack.c.l.b16 %v70
    %v228 = vunpack.c.h.b16 %v70
    %v229 = vunpack.c.l.b16 %v71
    %v230 = vunpack.c.h.b16 %v71
    %v231 = vunpack.c.l.b16 %v72
    %v232 = vunpack.c.h.b16 %v72
    %v233 = vunpack.c.l.b16 %v73
    %v234 = vunpack.c.h.b16 %v73
    %v235 = vunpack.c.l.b16 %v74
    %v236 = vunpack.c.h.b16 %v74
    %v237 = vunpack.c.l.b16 %v75
    %v238 = vunpack.c.h.b16 %v75
    %v239 = vunpack.c.l.b16 %v76
    %v240 = vunpack.c.h.b16 %v76
    %v241 = vpack.c.b16 %v233, %v225
    %v242 = vpack.c.b16 %v234, %v226
    %v243 = vpack.c.b16 %v235, %v227
    %v244 = vpack.c.b16 %v236, %v228
    %v245 = vpack.c.b16 %v237, %v229
    %v246 = vpack.c.b16 %v238, %v230
    %v247 = vpack.c.b16 %v239, %v231
    %v248 = vpack.c.b16 %v240, %v232
    %v385 = vunpack.c.l.b16 %v77
    %v386 = vunpack.c.h.b16 %v77
    %v387 = vunpack.c.l.b16 %v78
    %v388 = vunpack.c.h.b16 %v78
    %v389 = vunpack.c.l.b16 %v79
    %v390 = vunpack.c.h.b16 %v79
    %v391 = vunpack.c.l.b16 %v80
    %v392 = vunpack.c.h.b16 %v80
    %v393 = vunpack.c.l.b16 %v81
    %v394 = vunpack.c.h.b16 %v81
    %v395 = vunpack.c.l.b16 %v82
    %v396 = vunpack.c.h.b16 %v82
    %v397 = vunpack.c.l.b16 %v83
    %v398 = vunpack.c.h.b16 %v83
    %v399 = vunpack.c.l.b16 %v84
    %v400 = vunpack.c.h.b16 %v84
    %v401 = vunpack.c.l.b16 %v85
    %v402 = vunpack.c.h.b16 %v85
    %v403 = vunpack.c.l.b16 %v86
    %v404 = vunpack.c.h.b16 %v86
    %v405 = vunpack.c.l.b16 %v87
    %v406 = vunpack.c.h.b16 %v87
    %v407 = vunpack.c.l.b16 %v88
    %v408 = vunpack.c.h.b16 %v88
    %v409 = vunpack.c.l.b16 %v89
    %v410 = vunpack.c.h.b16 %v89
    %v411 = vunpack.c.l.b16 %v90
    %v412 = vunpack.c.h.b16 %v90
    %v413 = vunpack.c.l.b16 %v91
    %v414 = vunpack.c.h.b16 %v91
    %v415 = vunpack.c.l.b16 %v92
    %v416 = vunpack.c.h.b16 %v92
    %v417 = vunpack.c.l.b16 %v93
    %v418 = vunpack.c.h.b16 %v93
    %v419 = vunpack.c.l.b16 %v94
    %v420 = vunpack.c.h.b16 %v94
    %v421 = vunpack.c.l.b16 %v95
    %v422 = vunpack.c.h.b16 %v95
    %v423 = vunpack.c.l.b16 %v96
    %v424 = vunpack.c.h.b16 %v96
    %v425 = vunpack.c.l.b16 %v97
    %v426 = vunpack.c.h.b16 %v97
    %v427 = vunpack.c.l.b16 %v98
    %v428 = vunpack.c.h.b16 %v98
    %v429 = vunpack.c.l.b16 %v99
    %v430 = vunpack.c.h.b16 %v99
    %v431 = vunpack.c.l.b16 %v100
    %v432 = vunpack.c.h.b16 %v100
    %v433 = vunpack.c.l.b16 %v101
    %v434 = vunpack.c.h.b16 %v101
    %v435 = vunpack.c.l.b16 %v102
    %v436 = vunpack.c.h.b16 %v102
    %v437 = vunpack.c.l.b16 %v103
    %v438 = vunpack.c.h.b16 %v103
    %v439 = vunpack.c.l.b16 %v104
    %v440 = vunpack.c.h.b16 %v104
    %v441 = vunpack.c.l.b16 %v105
    %v442 = vunpack.c.h.b16 %v105
    %v443 = vunpack.c.l.b16 %v106
    %v444 = vunpack.c.h.b16 %v106
    %v445 = vunpack.c.l.b16 %v107
    %v446 = vunpack.c.h.b16 %v107
    %v447 = vunpack.c.l.b16 %v108
    %v448 = vunpack.c.h.b16 %v108
    %v449 = vunpack.c.l.b16 %v109
    %v450 = vunpack.c.h.b16 %v109
    %v451 = vunpack.c.l.b16 %v110
    %v452 = vunpack.c.h.b16 %v110
    %v453 = vunpack.c.l.b16 %v111
    %v454 = vunpack.c.h.b16 %v111
    %v455 = vunpack.c.l.b16 %v112
    %v456 = vunpack.c.h.b16 %v112
    %v457 = vunpack.c.l.b16 %v113
    %v458 = vunpack.c.h.b16 %v113
    %v459 = vunpack.c.l.b16 %v114
    %v460 = vunpack.c.h.b16 %v114
    %v461 = vunpack.c.l.b16 %v115
    %v462 = vunpack.c.h.b16 %v115
    %v463 = vunpack.c.l.b16 %v116
    %v464 = vunpack.c.h.b16 %v116
    %v465 = vunpack.c.l.b16 %v117
    %v466 = vunpack.c.h.b16 %v117
    %v467 = vunpack.c.l.b16 %v118
    %v468 = vunpack.c.h.b16 %v118
    %v469 = vunpack.c.l.b16 %v119
    %v470 = vunpack.c.h.b16 %v119
    %v471 = vunpack.c.l.b16 %v120
    %v472 = vunpack.c.h.b16 %v120
    %v473 = vunpack.c.l.b16 %v121
    %v474 = vunpack.c.h.b16 %v121
    %v475 = vunpack.c.l.b16 %v122
    %v476 = vunpack.c.h.b16 %v122
    %v477 = vunpack.c.l.b16 %v123
    %v478 = vunpack.c.h.b16 %v123
    %v479 = vunpack.c.l.b16 %v124
    %v480 = vunpack.c.h.b16 %v124
    %v481 = vunpack.c.l.b16 %v125
    %v482 = vunpack.c.h.b16 %v125
    %v483 = vunpack.c.l.b16 %v126
    %v484 = vunpack.c.h.b16 %v126
    %v485 = vunpack.c.l.b16 %v127
    %v486 = vunpack.c.h.b16 %v127
    %v487 = vunpack.c.l.b16 %v128
    %v488 = vunpack.c.h.b16 %v128
    %v489 = vunpack.c.l.b16 %v129
    %v490 = vunpack.c.h.b16 %v129
    %v491 = vunpack.c.l.b16 %v130
    %v492 = vunpack.c.h.b16 %v130
    %v493 = vunpack.c.l.b16 %v131
    %v494 = vunpack.c.h.b16 %v131
    %v495 = vunpack.c.l.b16 %v132
    %v496 = vunpack.c.h.b16 %v132
    %v497 = vunpack.c.l.b16 %v133
    %v498 = vunpack.c.h.b16 %v133
    %v499 = vunpack.c.l.b16 %v134
    %v500 = vunpack.c.h.b16 %v134
    %v501 = vunpack.c.l.b16 %v135
    %v502 = vunpack.c.h.b16 %v135
    %v503 = vunpack.c.l.b16 %v136
    %v504 = vunpack.c.h.b16 %v136
    %v505 = vunpack.c.l.b16 %v137
    %v506 = vunpack.c.h.b16 %v137
    %v507 = vunpack.c.l.b16 %v138
    %v508 = vunpack.c.h.b16 %v138
    %v509 = vunpack.c.l.b16 %v139
    %v510 = vunpack.c.h.b16 %v139
    %v511 = vunpack.c.l.b16 %v140
    %v512 = vunpack.c.h.b16 %v140
    %v513 = vunpack.c.l.b16 %v141
    %v514 = vunpack.c.h.b16 %v141
    %v515 = vunpack.c.l.b16 %v142
    %v516 = vunpack.c.h.b16 %v142
    %v517 = vunpack.c.l.b16 %v143
    %v518 = vunpack.c.h.b16 %v143
    %v519 = vunpack.c.l.b16 %v144
    %v520 = vunpack.c.h.b16 %v144
    %v521 = vunpack.c.l.b16 %v145
    %v522 = vunpack.c.h.b16 %v145
    %v523 = vunpack.c.l.b16 %v146
    %v524 = vunpack.c.h.b16 %v146
    %v525 = vunpack.c.l.b16 %v147
    %v526 = vunpack.c.h.b16 %v147
    %v527 = vunpack.c.l.b16 %v148
    %v528 = vunpack.c.h.b16 %v148
    %v529 = vunpack.c.l.b16 %v149
    %v530 = vunpack.c.h.b16 %v149
    %v531 = vunpack.c.l.b16 %v150
    %v532 = vunpack.c.h.b16 %v150
    %v533 = vunpack.c.l.b16 %v151
    %v534 = vunpack.c.h.b16 %v151
    %v535 = vunpack.c.l.b16 %v152
    %v536 = vunpack.c.h.b16 %v152
    %v537 = vunpack.c.l.b16 %v153
    %v538 = vunpack.c.h.b16 %v153
    %v539 = vunpack.c.l.b16 %v154
    %v540 = vunpack.c.h.b16 %v154
    %v541 = vunpack.c.l.b16 %v155
    %v542 = vunpack.c.h.b16 %v155
    %v543 = vunpack.c.l.b16 %v156
    %v544 = vunpack.c.h.b16 %v156
    %v545 = vunpack.c.l.b16 %v157
    %v546 = vunpack.c.h.b16 %v157
    %v547 = vunpack.c.l.b16 %v158
    %v548 = vunpack.c.h.b16 %v158
    %v549 = vunpack.c.l.b16 %v159
    %v550 = vunpack.c.h.b16 %v159
    %v551 = vunpack.c.l.b16 %v160
    %v552 = vunpack.c.h.b16 %v160
    %v553 = vunpack.c.l.b16 %v161
    %v554 = vunpack.c.h.b16 %v161
    %v555 = vunpack.c.l.b16 %v162
    %v556 = vunpack.c.h.b16 %v162
    %v557 = vunpack.c.l.b16 %v163
    %v558 = vunpack.c.h.b16 %v163
    %v559 = vunpack.c.l.b16 %v164
    %v560 = vunpack.c.h.b16 %v164
    %v561 = vunpack.c.l.b16 %v165
    %v562 = vunpack.c.h.b16 %v165
    %v563 = vunpack.c.l.b16 %v166
    %v564 = vunpack.c.h.b16 %v166
    %v565 = vunpack.c.l.b16 %v167
    %v566 = vunpack.c.h.b16 %v167
    %v567 = vunpack.c.l.b16 %v168
    %v568 = vunpack.c.h.b16 %v168
    %v569 = vunpack.c.l.b16 %v169
    %v570 = vunpack.c.h.b16 %v169
    %v571 = vunpack.c.l.b16 %v170
    %v572 = vunpack.c.h.b16 %v170
    %v573 = vunpack.c.l.b16 %v171
    %v574 = vunpack.c.h.b16 %v171
    %v575 = vunpack.c.l.b16 %v172
    %v576 = vunpack.c.h.b16 %v172
    %v577 = vunpack.c.l.b16 %v173
    %v578 = vunpack.c.h.b16 %v173
    %v579 = vunpack.c.l.b16 %v174
    %v580 = vunpack.c.h.b16 %v174
    %v581 = vunpack.c.l.b16 %v175
    %v582 = vunpack.c.h.b16 %v175
    %v583 = vunpack.c.l.b16 %v176
    %v584 = vunpack.c.h.b16 %v176
    %v585 = vunpack.c.l.b16 %v177
    %v586 = vunpack.c.h.b16 %v177
    %v587 = vunpack.c.l.b16 %v178
    %v588 = vunpack.c.h.b16 %v178
    %v589 = vunpack.c.l.b16 %v179
    %v590 = vunpack.c.h.b16 %v179
    %v591 = vunpack.c.l.b16 %v180
    %v592 = vunpack.c.h.b16 %v180
    %v593 = vunpack.c.l.b16 %v181
    %v594 = vunpack.c.h.b16 %v181
    %v595 = vunpack.c.l.b16 %v182
    %v596 = vunpack.c.h.b16 %v182
    %v597 = vunpack.c.l.b16 %v183
    %v598 = vunpack.c.h.b16 %v183
    %v599 = vunpack.c.l.b16 %v184
    %v600 = vunpack.c.h.b16 %v184
    %v601 = vunpack.c.l.b16 %v185
    %v602 = vunpack.c.h.b16 %v185
    %v603 = vunpack.c.l.b16 %v186
    %v604 = vunpack.c.h.b16 %v186
    %v605 = vunpack.c.l.b16 %v187
    %v606 = vunpack.c.h.b16 %v187
    %v607 = vunpack.c.l.b16 %v188
    %v608 = vunpack.c.h.b16 %v188
    %v609 = vunpack.c.l.b16 %v189
    %v610 = vunpack.c.h.b16 %v189
    %v611 = vunpack.c.l.b16 %v190
    %v612 = vunpack.c.h.b16 %v190
    %v613 = vunpack.c.l.b16 %v191
    %v614 = vunpack.c.h.b16 %v191
    %v615 = vunpack.c.l.b16 %v192
    %v616 = vunpack.c.h.b16 %v192
    %v617 = vunpack.c.l.b16 %v193
    %v618 = vunpack.c.h.b16 %v193
    %v619 = vunpack.c.l.b16 %v194
    %v620 = vunpack.c.h.b16 %v194
    %v621 = vunpack.c.l.b16 %v195
    %v622 = vunpack.c.h.b16 %v195
    %v623 = vunpack.c.l.b16 %v196
    %v624 = vunpack.c.h.b16 %v196
    %v625 = vunpack.c.l.b16 %v197
    %v626 = vunpack.c.h.b16 %v197
    %v627 = vunpack.c.l.b16 %v198
    %v628 = vunpack.c.h.b16 %v198
    %v629 = vunpack.c.l.b16 %v199
    %v630 = vunpack.c.h.b16 %v199
    %v631 = vunpack.c.l.b16 %v200
    %v632 = vunpack.c.h.b16 %v200
    %v633 = vunpack.c.l.b16 %v201
    %v634 = vunpack.c.h.b16 %v201
    %v635 = vunpack.c.l.b16 %v202
    %v636 = vunpack.c.h.b16 %v202
    %v637 = vunpack.c.l.b16 %v203
    %v638 = vunpack.c.h.b16 %v203
    %v639 = vunpack.c.l.b16 %v204
    %v640 = vunpack.c.h.b16 %v204
    %v641 = vpack.c.b16 %v387, %v385
    %v642 = vpack.c.b16 %v388, %v386
    %v643 = vpack.c.b16 %v391, %v389
    %v644 = vpack.c.b16 %v392, %v390
    %v645 = vpack.c.b16 %v395, %v393
    %v646 = vpack.c.b16 %v396, %v394
    %v647 = vpack.c.b16 %v399, %v397
    %v648 = vpack.c.b16 %v400, %v398
    %v649 = vpack.c.b16 %v403, %v401
    %v650 = vpack.c.b16 %v404, %v402
    %v651 = vpack.c.b16 %v407, %v405
    %v652 = vpack.c.b16 %v408, %v406
    %v653 = vpack.c.b16 %v411, %v409
    %v654 = vpack.c.b16 %v412, %v410
    %v655 = vpack.c.b16 %v415, %v413
    %v656 = vpack.c.b16 %v416, %v414
    %v657 = vpack.c.b16 %v419, %v417
    %v658 = vpack.c.b16 %v420, %v418
    %v659 = vpack.c.b16 %v423, %v421
    %v660 = vpack.c.b16 %v424, %v422
    %v661 = vpack.c.b16 %v427, %v425
    %v662 = vpack.c.b16 %v428, %v426
    %v663 = vpack.c.b16 %v431, %v429
    %v664 = vpack.c.b16 %v432, %v430
    %v665 = vpack.c.b16 %v435, %v433
    %v666 = vpack.c.b16 %v436, %v434
    %v667 = vpack.c.b16 %v439, %v437
    %v668 = vpack.c.b16 %v440, %v438
    %v669 = vpack.c.b16 %v443, %v441
    %v670 = vpack.c.b16 %v444, %v442
    %v671 = vpack.c.b16 %v447, %v445
    %v672 = vpack.c.b16 %v448, %v446
    %v673 = vpack.c.b16 %v451, %v449
    %v674 = vpack.c.b16 %v452, %v450
    %v675 = vpack.c.b16 %v455, %v453
    %v676 = vpack.c.b16 %v456, %v454
    %v677 = vpack.c.b16 %v459, %v457
    %v678 = vpack.c.b16 %v460, %v458
    %v679 = vpack.c.b16 %v463, %v461
    %v680 = vpack.c.b16 %v464, %v462
    %v681 = vpack.c.b16 %v467, %v465
    %v682 = vpack.c.b16 %v468, %v466
    %v683 = vpack.c.b16 %v471, %v469
    %v684 = vpack.c.b16 %v472, %v470
    %v685 = vpack.c.b16 %v475, %v473
    %v686 = vpack.c.b16 %v476, %v474
    %v687 = vpack.c.b16 %v479, %v477
    %v688 = vpack.c.b16 %v480, %v478
    %v689 = vpack.c.b16 %v483, %v481
    %v690 = vpack.c.b16 %v484, %v482
    %v691 = vpack.c.b16 %v487, %v485
    %v692 = vpack.c.b16 %v488, %v486
    %v693 = vpack.c.b16 %v491, %v489
    %v694 = vpack.c.b16 %v492, %v490
    %v695 = vpack.c.b16 %v495, %v493
    %v696 = vpack.c.b16 %v496, %v494
    %v697 = vpack.c.b16 %v499, %v497
    %v698 = vpack.c.b16 %v500, %v498
    %v699 = vpack.c.b16 %v503, %v501
    %v700 = vpack.c.b16 %v504, %v502
    %v701 = vpack.c.b16 %v507, %v505
    %v702 = vpack.c.b16 %v508, %v506
    %v703 = vpack.c.b16 %v511, %v509
    %v704 = vpack.c.b16 %v512, %v510
    %v705 = vpack.c.b16 %v515, %v513
    %v706 = vpack.c.b16 %v516, %v514
    %v707 = vpack.c.b16 %v519, %v517
    %v708 = vpack.c.b16 %v520, %v518
    %v709 = vpack.c.b16 %v523, %v521
    %v710 = vpack.c.b16 %v524, %v522
    %v711 = vpack.c.b16 %v527, %v525
    %v712 = vpack.c.b16 %v528, %v526
    %v713 = vpack.c.b16 %v531, %v529
    %v714 = vpack.c.b16 %v532, %v530
    %v715 = vpack.c.b16 %v535, %v533
    %v716 = vpack.c.b16 %v536, %v534
    %v717 = vpack.c.b16 %v539, %v537
    %v718 = vpack.c.b16 %v540, %v538
    %v719 = vpack.c.b16 %v543, %v541
    %v720 = vpack.c.b16 %v544, %v542
    %v721 = vpack.c.b16 %v547, %v545
    %v722 = vpack.c.b16 %v548, %v546
    %v723 = vpack.c.b16 %v551, %v549
    %v724 = vpack.c.b16 %v552, %v550
    %v725 = vpack.c.b16 %v555, %v553
    %v726 = vpack.c.b16 %v556, %v554
    %v727 = vpack.c.b16 %v559, %v557
    %v728 = vpack.c.b16 %v560, %v558
    %v729 = vpack.c.b16 %v563, %v561
    %v730 = vpack.c.b16 %v564, %v562
    %v731 = vpack.c.b16 %v567, %v565
    %v732 = vpack.c.b16 %v568, %v566
    %v733 = vpack.c.b16 %v571, %v569
    %v734 = vpack.c.b16 %v572, %v570
    %v735 = vpack.c.b16 %v575, %v573
    %v736 = vpack.c.b16 %v576, %v574
    %v737 = vpack.c.b16 %v579, %v577
    %v738 = vpack.c.b16 %v580, %v578
    %v739 = vpack.c.b16 %v583, %v581
    %v740 = vpack.c.b16 %v584, %v582
    %v741 = vpack.c.b16 %v587, %v585
    %v742 = vpack.c.b16 %v588, %v586
    %v743 = vpack.c.b16 %v591, %v589
    %v744 = vpack.c.b16 %v592, %v590
    %v745 = vpack.c.b16 %v595, %v593
    %v746 = vpack.c.b16 %v596, %v594
    %v747 = vpack.c.b16 %v599, %v597
    %v748 = vpack.c.b16 %v600, %v598
    %v749 = vpack.c.b16 %v603, %v601
    %v750 = vpack.c.b16 %v604, %v602
    %v751 = vpack.c.b16 %v607, %v605
    %v752 = vpack.c.b16 %v608, %v606
    %v753 = vpack.c.b16 %v611, %v609
    %v754 = vpack.c.b16 %v612, %v610
    %v755 = vpack.c.b16 %v615, %v613
    %v756 = vpack.c.b16 %v616, %v614
    %v757 = vpack.c.b16 %v619, %v617
    %v758 = vpack.c.b16 %v620, %v618
    %v759 = vpack.c.b16 %v623, %v621
    %v760 = vpack.c.b16 %v624, %v622
    %v761 = vpack.c.b16 %v627, %v625
    %v762 = vpack.c.b16 %v628, %v626
    %v763 = vpack.c.b16 %v631, %v629
    %v764 = vpack.c.b16 %v632, %v630
    %v765 = vpack.c.b16 %v635, %v633
    %v766 = vpack.c.b16 %v636, %v634
    %v767 = vpack.c.b16 %v639, %v637
    %v768 = vpack.c.b16 %v640, %v638
    %897 = vmatprep.subr.bf16.mxu0 %v642
    %898 = vmatpush1.bf16.msra.mxu0 %v641
    %899 = vmatprep.subr.bf16.mxu0 %v644
    %900 = vmatpush1.bf16.msra.mxu0 %v643
    %901 = vmatprep.subr.bf16.mxu0 %v646
    %902 = vmatpush1.bf16.msra.mxu0 %v645
    %903 = vmatprep.subr.bf16.mxu0 %v648
    %904 = vmatpush1.bf16.msra.mxu0 %v647
    %905 = vmatprep.subr.bf16.mxu0 %v650
    %906 = vmatpush1.bf16.msra.mxu0 %v649
    %907 = vmatprep.subr.bf16.mxu0 %v652
    %908 = vmatpush1.bf16.msra.mxu0 %v651
    %909 = vmatprep.subr.bf16.mxu0 %v654
    %910 = vmatpush1.bf16.msra.mxu0 %v653
    %911 = vmatprep.subr.bf16.mxu0 %v656
    %912 = vmatpush1.bf16.msra.mxu0 %v655
    %913 = vmatprep.subr.bf16.mxu0 %v658
    %914 = vmatpush1.bf16.msra.mxu0 %v657
    %915 = vmatprep.subr.bf16.mxu0 %v660
    %916 = vmatpush1.bf16.msra.mxu0 %v659
    %917 = vmatprep.subr.bf16.mxu0 %v662
    %918 = vmatpush1.bf16.msra.mxu0 %v661
    %919 = vmatprep.subr.bf16.mxu0 %v664
    %920 = vmatpush1.bf16.msra.mxu0 %v663
    %921 = vmatprep.subr.bf16.mxu0 %v666
    %922 = vmatpush1.bf16.msra.mxu0 %v665
    %923 = vmatprep.subr.bf16.mxu0 %v668
    %924 = vmatpush1.bf16.msra.mxu0 %v667
    %925 = vmatprep.subr.bf16.mxu0 %v670
    %926 = vmatpush1.bf16.msra.mxu0 %v669
    %927 = vmatprep.subr.bf16.mxu0 %v672
    %928 = vmatpush1.bf16.msra.mxu0 %v671
    %929 = vmatprep.mubr.bf16.mxu0 %v242
    %930 = vmatmul.mubr.bf16.gmra.mrb[0].mxu0 %v241
    %v931 = vpop.f32.mrb[0].mxu0
    %v932 = vadd.f32 %v210, %v931
    %v933 = vpop.f32.mrb[0].mxu0
    %v934 = vadd.f32 %v214, %v933
    %v935 = vpop.f32.mrb[0].mxu0
    %v936 = vadd.f32 %v210, %v935
    %v937 = vpop.f32.mrb[0].mxu0
    %v938 = vadd.f32 %v214, %v937
    %939 = vdwg.mxu0
    %940 = vmatprep.subr.bf16.mxu0 %v674
    %941 = vmatpush1.bf16.msra.mxu0 %v673
    %942 = vmatprep.subr.bf16.mxu0 %v676
    %943 = vmatpush1.bf16.msra.mxu0 %v675
    %944 = vmatprep.subr.bf16.mxu0 %v678
    %945 = vmatpush1.bf16.msra.mxu0 %v677
    %946 = vmatprep.subr.bf16.mxu0 %v680
    %947 = vmatpush1.bf16.msra.mxu0 %v679
    %948 = vmatprep.subr.bf16.mxu0 %v682
    %949 = vmatpush1.bf16.msra.mxu0 %v681
    %950 = vmatprep.subr.bf16.mxu0 %v684
    %951 = vmatpush1.bf16.msra.mxu0 %v683
    %952 = vmatprep.subr.bf16.mxu0 %v686
    %953 = vmatpush1.bf16.msra.mxu0 %v685
    %954 = vmatprep.subr.bf16.mxu0 %v688
    %955 = vmatpush1.bf16.msra.mxu0 %v687
    %956 = vmatprep.subr.bf16.mxu0 %v690
    %957 = vmatpush1.bf16.msra.mxu0 %v689
    %958 = vmatprep.subr.bf16.mxu0 %v692
    %959 = vmatpush1.bf16.msra.mxu0 %v691
    %960 = vmatprep.subr.bf16.mxu0 %v694
    %961 = vmatpush1.bf16.msra.mxu0 %v693
    %962 = vmatprep.subr.bf16.mxu0 %v696
    %963 = vmatpush1.bf16.msra.mxu0 %v695
    %964 = vmatprep.subr.bf16.mxu0 %v698
    %965 = vmatpush1.bf16.msra.mxu0 %v697
    %966 = vmatprep.subr.bf16.mxu0 %v700
    %967 = vmatpush1.bf16.msra.mxu0 %v699
    %968 = vmatprep.subr.bf16.mxu0 %v702
    %969 = vmatpush1.bf16.msra.mxu0 %v701
    %970 = vmatprep.subr.bf16.mxu0 %v704
    %971 = vmatpush1.bf16.msra.mxu0 %v703
    %972 = vmatprep.mubr.bf16.mxu0 %v244
    %973 = vmatmul.mubr.bf16.gmra.mrb[0].mxu0 %v243
    %v974 = vpop.f32.mrb[0].mxu0
    %v975 = vadd.f32 %v932, %v974
    %v976 = vpop.f32.mrb[0].mxu0
    %v977 = vadd.f32 %v934, %v976
    %v978 = vpop.f32.mrb[0].mxu0
    %v979 = vadd.f32 %v936, %v978
    %v980 = vpop.f32.mrb[0].mxu0
    %v981 = vadd.f32 %v938, %v980
    %982 = vdwg.mxu0
    %983 = vmatprep.subr.bf16.mxu0 %v706
    %984 = vmatpush1.bf16.msra.mxu0 %v705
    %985 = vmatprep.subr.bf16.mxu0 %v708
    %986 = vmatpush1.bf16.msra.mxu0 %v707
    %987 = vmatprep.subr.bf16.mxu0 %v710
    %988 = vmatpush1.bf16.msra.mxu0 %v709
    %989 = vmatprep.subr.bf16.mxu0 %v712
    %990 = vmatpush1.bf16.msra.mxu0 %v711
    %991 = vmatprep.subr.bf16.mxu0 %v714
    %992 = vmatpush1.bf16.msra.mxu0 %v713
    %993 = vmatprep.subr.bf16.mxu0 %v716
    %994 = vmatpush1.bf16.msra.mxu0 %v715
    %995 = vmatprep.subr.bf16.mxu0 %v718
    %996 = vmatpush1.bf16.msra.mxu0 %v717
    %997 = vmatprep.subr.bf16.mxu0 %v720
    %998 = vmatpush1.bf16.msra.mxu0 %v719
    %999 = vmatprep.subr.bf16.mxu0 %v722
    %1000 = vmatpush1.bf16.msra.mxu0 %v721
    %1001 = vmatprep.subr.bf16.mxu0 %v724
    %1002 = vmatpush1.bf16.msra.mxu0 %v723
    %1003 = vmatprep.subr.bf16.mxu0 %v726
    %1004 = vmatpush1.bf16.msra.mxu0 %v725
    %1005 = vmatprep.subr.bf16.mxu0 %v728
    %1006 = vmatpush1.bf16.msra.mxu0 %v727
    %1007 = vmatprep.subr.bf16.mxu0 %v730
    %1008 = vmatpush1.bf16.msra.mxu0 %v729
    %1009 = vmatprep.subr.bf16.mxu0 %v732
    %1010 = vmatpush1.bf16.msra.mxu0 %v731
    %1011 = vmatprep.subr.bf16.mxu0 %v734
    %1012 = vmatpush1.bf16.msra.mxu0 %v733
    %1013 = vmatprep.subr.bf16.mxu0 %v736
    %1014 = vmatpush1.bf16.msra.mxu0 %v735
    %1015 = vmatprep.mubr.bf16.mxu0 %v246
    %1016 = vmatmul.mubr.bf16.gmra.mrb[0].mxu0 %v245
    %v1017 = vpop.f32.mrb[0].mxu0
    %v1018 = vadd.f32 %v975, %v1017
    %v1019 = vpop.f32.mrb[0].mxu0
    %v1020 = vadd.f32 %v977, %v1019
    %v1021 = vpop.f32.mrb[0].mxu0
    %v1022 = vadd.f32 %v979, %v1021
    %v1023 = vpop.f32.mrb[0].mxu0
    %v1024 = vadd.f32 %v981, %v1023
    %1025 = vdwg.mxu0
    %1026 = vmatprep.subr.bf16.mxu0 %v738
    %1027 = vmatpush1.bf16.msra.mxu0 %v737
    %1028 = vmatprep.subr.bf16.mxu0 %v740
    %1029 = vmatpush1.bf16.msra.mxu0 %v739
    %1030 = vmatprep.subr.bf16.mxu0 %v742
    %1031 = vmatpush1.bf16.msra.mxu0 %v741
    %1032 = vmatprep.subr.bf16.mxu0 %v744
    %1033 = vmatpush1.bf16.msra.mxu0 %v743
    %1034 = vmatprep.subr.bf16.mxu0 %v746
    %1035 = vmatpush1.bf16.msra.mxu0 %v745
    %1036 = vmatprep.subr.bf16.mxu0 %v748
    %1037 = vmatpush1.bf16.msra.mxu0 %v747
    %1038 = vmatprep.subr.bf16.mxu0 %v750
    %1039 = vmatpush1.bf16.msra.mxu0 %v749
    %1040 = vmatprep.subr.bf16.mxu0 %v752
    %1041 = vmatpush1.bf16.msra.mxu0 %v751
    %1042 = vmatprep.subr.bf16.mxu0 %v754
    %1043 = vmatpush1.bf16.msra.mxu0 %v753
    %1044 = vmatprep.subr.bf16.mxu0 %v756
    %1045 = vmatpush1.bf16.msra.mxu0 %v755
    %1046 = vmatprep.subr.bf16.mxu0 %v758
    %1047 = vmatpush1.bf16.msra.mxu0 %v757
    %1048 = vmatprep.subr.bf16.mxu0 %v760
    %1049 = vmatpush1.bf16.msra.mxu0 %v759
    %1050 = vmatprep.subr.bf16.mxu0 %v762
    %1051 = vmatpush1.bf16.msra.mxu0 %v761
    %1052 = vmatprep.subr.bf16.mxu0 %v764
    %1053 = vmatpush1.bf16.msra.mxu0 %v763
    %1054 = vmatprep.subr.bf16.mxu0 %v766
    %1055 = vmatpush1.bf16.msra.mxu0 %v765
    %1056 = vmatprep.subr.bf16.mxu0 %v768
    %1057 = vmatpush1.bf16.msra.mxu0 %v767
    %1058 = vmatprep.mubr.bf16.mxu0 %v248
    %1059 = vmatmul.mubr.bf16.gmra.mrb[0].mxu0 %v247
    %v1060 = vpop.f32.mrb[0].mxu0
    %v1061 = vadd.f32 %v1018, %v1060
    %v1062 = vpop.f32.mrb[0].mxu0
    %v1063 = vadd.f32 %v1020, %v1062
    %v1064 = vpop.f32.mrb[0].mxu0
    %v1065 = vadd.f32 %v1022, %v1064
    %v1066 = vpop.f32.mrb[0].mxu0
    %v1067 = vadd.f32 %v1024, %v1066
    %1068 = vdwg.mxu0
    %v1069 = vmax.f32 %v1061, 0.0
    %v1070 = vmax.f32 %v1063, 0.0
    %v1071 = vmax.f32 %v1065, 0.0
    %v1072 = vmax.f32 %v1067, 0.0
    %v1073 = vpack.c.bf16 %v1071, %v1069
    %v1074 = vpack.c.bf16 %v1072, %v1070
    %v1075 = vld [vmem:[#allocation7] sm:$0xff]
    %v1076 = vld [vmem:[#allocation7 + $0x8] sm:$0xff]
    %v1077 = vld [vmem:[#allocation7 + $0x10] sm:$0xff]
    %v1078 = vld [vmem:[#allocation7 + $0x18] sm:$0xff]
    %v1079 = vld [vmem:[#allocation7 + $0x20] sm:$0xff]
    %v1080 = vld [vmem:[#allocation7 + $0x28] sm:$0xff]
    %v1081 = vld [vmem:[#allocation7 + $0x30] sm:$0xff]
    %v1082 = vld [vmem:[#allocation7 + $0x38] sm:$0xff]
    %v1083 = vld [vmem:[#allocation7 + $0x40] sm:$0xff]
    %v1084 = vld [vmem:[#allocation7 + $0x48] sm:$0xff]
    %v1085 = vld [vmem:[#allocation7 + $0x50] sm:$0xff]
    %v1086 = vld [vmem:[#allocation7 + $0x58] sm:$0xff]
    %v1087 = vld [vmem:[#allocation7 + $0x60] sm:$0xff]
    %v1088 = vld [vmem:[#allocation7 + $0x68] sm:$0xff]
    %v1089 = vld [vmem:[#allocation7 + $0x70] sm:$0xff]
    %v1090 = vld [vmem:[#allocation7 + $0x78] sm:$0xff]
    %v1091 = vld [vmem:[#allocation7 + $0x80] sm:$0xff]
    %v1092 = vld [vmem:[#allocation7 + $0x88] sm:$0xff]
    %v1093 = vld [vmem:[#allocation7 + $0x90] sm:$0xff]
    %v1094 = vld [vmem:[#allocation7 + $0x98] sm:$0xff]
    %v1095 = vld [vmem:[#allocation7 + $0xa0] sm:$0xff]
    %v1096 = vld [vmem:[#allocation7 + $0xa8] sm:$0xff]
    %v1097 = vld [vmem:[#allocation7 + $0xb0] sm:$0xff]
    %v1098 = vld [vmem:[#allocation7 + $0xb8] sm:$0xff]
    %v1099 = vld [vmem:[#allocation7 + $0xc0] sm:$0xff]
    %v1100 = vld [vmem:[#allocation7 + $0xc8] sm:$0xff]
    %v1101 = vld [vmem:[#allocation7 + $0xd0] sm:$0xff]
    %v1102 = vld [vmem:[#allocation7 + $0xd8] sm:$0xff]
    %v1103 = vld [vmem:[#allocation7 + $0xe0] sm:$0xff]
    %v1104 = vld [vmem:[#allocation7 + $0xe8] sm:$0xff]
    %v1105 = vld [vmem:[#allocation7 + $0xf0] sm:$0xff]
    %v1106 = vld [vmem:[#allocation7 + $0xf8] sm:$0xff]
    %v1107 = vld [vmem:[%s4] sm:$0x3]
    %v1109 = vlaneseq
    %v1110 = vshrl.u32 %v1109, 7
    %v1111 = vsub.s32 0, %v1110
    %v1112 = vrot.slane %v1107, %v1111
    %v1113 = vlaneseq
    %v1114 = vshrl.u32 %v1113, 7
    %v1115 = vsub.s32 1, %v1114
    %v1116 = vrot.slane %v1107, %v1115
    %v1151 = vunpack.c.l.b16 %v1075
    %v1152 = vunpack.c.h.b16 %v1075
    %v1153 = vunpack.c.l.b16 %v1076
    %v1154 = vunpack.c.h.b16 %v1076
    %v1155 = vunpack.c.l.b16 %v1077
    %v1156 = vunpack.c.h.b16 %v1077
    %v1157 = vunpack.c.l.b16 %v1078
    %v1158 = vunpack.c.h.b16 %v1078
    %v1159 = vunpack.c.l.b16 %v1079
    %v1160 = vunpack.c.h.b16 %v1079
    %v1161 = vunpack.c.l.b16 %v1080
    %v1162 = vunpack.c.h.b16 %v1080
    %v1163 = vunpack.c.l.b16 %v1081
    %v1164 = vunpack.c.h.b16 %v1081
    %v1165 = vunpack.c.l.b16 %v1082
    %v1166 = vunpack.c.h.b16 %v1082
    %v1167 = vunpack.c.l.b16 %v1083
    %v1168 = vunpack.c.h.b16 %v1083
    %v1169 = vunpack.c.l.b16 %v1084
    %v1170 = vunpack.c.h.b16 %v1084
    %v1171 = vunpack.c.l.b16 %v1085
    %v1172 = vunpack.c.h.b16 %v1085
    %v1173 = vunpack.c.l.b16 %v1086
    %v1174 = vunpack.c.h.b16 %v1086
    %v1175 = vunpack.c.l.b16 %v1087
    %v1176 = vunpack.c.h.b16 %v1087
    %v1177 = vunpack.c.l.b16 %v1088
    %v1178 = vunpack.c.h.b16 %v1088
    %v1179 = vunpack.c.l.b16 %v1089
    %v1180 = vunpack.c.h.b16 %v1089
    %v1181 = vunpack.c.l.b16 %v1090
    %v1182 = vunpack.c.h.b16 %v1090
    %v1183 = vunpack.c.l.b16 %v1091
    %v1184 = vunpack.c.h.b16 %v1091
    %v1185 = vunpack.c.l.b16 %v1092
    %v1186 = vunpack.c.h.b16 %v1092
    %v1187 = vunpack.c.l.b16 %v1093
    %v1188 = vunpack.c.h.b16 %v1093
    %v1189 = vunpack.c.l.b16 %v1094
    %v1190 = vunpack.c.h.b16 %v1094
    %v1191 = vunpack.c.l.b16 %v1095
    %v1192 = vunpack.c.h.b16 %v1095
    %v1193 = vunpack.c.l.b16 %v1096
    %v1194 = vunpack.c.h.b16 %v1096
    %v1195 = vunpack.c.l.b16 %v1097
    %v1196 = vunpack.c.h.b16 %v1097
    %v1197 = vunpack.c.l.b16 %v1098
    %v1198 = vunpack.c.h.b16 %v1098
    %v1199 = vunpack.c.l.b16 %v1099
    %v1200 = vunpack.c.h.b16 %v1099
    %v1201 = vunpack.c.l.b16 %v1100
    %v1202 = vunpack.c.h.b16 %v1100
    %v1203 = vunpack.c.l.b16 %v1101
    %v1204 = vunpack.c.h.b16 %v1101
    %v1205 = vunpack.c.l.b16 %v1102
    %v1206 = vunpack.c.h.b16 %v1102
    %v1207 = vunpack.c.l.b16 %v1103
    %v1208 = vunpack.c.h.b16 %v1103
    %v1209 = vunpack.c.l.b16 %v1104
    %v1210 = vunpack.c.h.b16 %v1104
    %v1211 = vunpack.c.l.b16 %v1105
    %v1212 = vunpack.c.h.b16 %v1105
    %v1213 = vunpack.c.l.b16 %v1106
    %v1214 = vunpack.c.h.b16 %v1106
    %v1215 = vpack.c.b16 %v1153, %v1151
    %v1216 = vpack.c.b16 %v1154, %v1152
    %v1217 = vpack.c.b16 %v1157, %v1155
    %v1218 = vpack.c.b16 %v1158, %v1156
    %v1219 = vpack.c.b16 %v1161, %v1159
    %v1220 = vpack.c.b16 %v1162, %v1160
    %v1221 = vpack.c.b16 %v1165, %v1163
    %v1222 = vpack.c.b16 %v1166, %v1164
    %v1223 = vpack.c.b16 %v1169, %v1167
    %v1224 = vpack.c.b16 %v1170, %v1168
    %v1225 = vpack.c.b16 %v1173, %v1171
    %v1226 = vpack.c.b16 %v1174, %v1172
    %v1227 = vpack.c.b16 %v1177, %v1175
    %v1228 = vpack.c.b16 %v1178, %v1176
    %v1229 = vpack.c.b16 %v1181, %v1179
    %v1230 = vpack.c.b16 %v1182, %v1180
    %v1231 = vpack.c.b16 %v1185, %v1183
    %v1232 = vpack.c.b16 %v1186, %v1184
    %v1233 = vpack.c.b16 %v1189, %v1187
    %v1234 = vpack.c.b16 %v1190, %v1188
    %v1235 = vpack.c.b16 %v1193, %v1191
    %v1236 = vpack.c.b16 %v1194, %v1192
    %v1237 = vpack.c.b16 %v1197, %v1195
    %v1238 = vpack.c.b16 %v1198, %v1196
    %v1239 = vpack.c.b16 %v1201, %v1199
    %v1240 = vpack.c.b16 %v1202, %v1200
    %v1241 = vpack.c.b16 %v1205, %v1203
    %v1242 = vpack.c.b16 %v1206, %v1204
    %v1243 = vpack.c.b16 %v1209, %v1207
    %v1244 = vpack.c.b16 %v1210, %v1208
    %v1245 = vpack.c.b16 %v1213, %v1211
    %v1246 = vpack.c.b16 %v1214, %v1212
    %1279 = vmatprep.subr.bf16.mxu0 %v1216
    %1280 = vmatpush1.bf16.msra.mxu0 %v1215
    %1281 = vmatprep.subr.bf16.mxu0 %v1218
    %1282 = vmatpush1.bf16.msra.mxu0 %v1217
    %1283 = vmatprep.subr.bf16.mxu0 %v1220
    %1284 = vmatpush1.bf16.msra.mxu0 %v1219
    %1285 = vmatprep.subr.bf16.mxu0 %v1222
    %1286 = vmatpush1.bf16.msra.mxu0 %v1221
    %1287 = vmatprep.subr.bf16.mxu0 %v1224
    %1288 = vmatpush1.bf16.msra.mxu0 %v1223
    %1289 = vmatprep.subr.bf16.mxu0 %v1226
    %1290 = vmatpush1.bf16.msra.mxu0 %v1225
    %1291 = vmatprep.subr.bf16.mxu0 %v1228
    %1292 = vmatpush1.bf16.msra.mxu0 %v1227
    %1293 = vmatprep.subr.bf16.mxu0 %v1230
    %1294 = vmatpush1.bf16.msra.mxu0 %v1229
    %1295 = vmatprep.subr.bf16.mxu0 %v1232
    %1296 = vmatpush1.bf16.msra.mxu0 %v1231
    %1297 = vmatprep.subr.bf16.mxu0 %v1234
    %1298 = vmatpush1.bf16.msra.mxu0 %v1233
    %1299 = vmatprep.subr.bf16.mxu0 %v1236
    %1300 = vmatpush1.bf16.msra.mxu0 %v1235
    %1301 = vmatprep.subr.bf16.mxu0 %v1238
    %1302 = vmatpush1.bf16.msra.mxu0 %v1237
    %1303 = vmatprep.subr.bf16.mxu0 %v1240
    %1304 = vmatpush1.bf16.msra.mxu0 %v1239
    %1305 = vmatprep.subr.bf16.mxu0 %v1242
    %1306 = vmatpush1.bf16.msra.mxu0 %v1241
    %1307 = vmatprep.subr.bf16.mxu0 %v1244
    %1308 = vmatpush1.bf16.msra.mxu0 %v1243
    %1309 = vmatprep.subr.bf16.mxu0 %v1246
    %1310 = vmatpush1.bf16.msra.mxu0 %v1245
    %1311 = vmatprep.mubr.bf16.mxu0 %v1074
    %1312 = vmatmul.mubr.bf16.gmra.mrb[0].mxu0 %v1073
    %v1313 = vpop.f32.mrb[0].mxu0
    %v1314 = vadd.f32 %v1112, %v1313
    %v1315 = vpop.f32.mrb[0].mxu0
    %v1316 = vadd.f32 %v1116, %v1315
    %v1317 = vpop.f32.mrb[0].mxu0
    %v1318 = vadd.f32 %v1112, %v1317
    %v1319 = vpop.f32.mrb[0].mxu0
    %v1320 = vadd.f32 %v1116, %v1319
    %1321 = vdwg.mxu0
    %v1322 = vmax.f32 %v1314, 0.0
    %v1323 = vmax.f32 %v1316, 0.0
    %v1324 = vmax.f32 %v1318, 0.0
    %v1325 = vmax.f32 %v1320, 0.0
    %v1326 = vld [vmem:[%s5] sm:$0x3]
    %v1328 = vlaneseq
    %v1329 = vshrl.u32 %v1328, 7
    %v1330 = vsub.s32 0, %v1329
    %v1331 = vrot.slane %v1326, %v1330
    %v1332 = vlaneseq
    %v1333 = vshrl.u32 %v1332, 7
    %v1334 = vsub.s32 1, %v1333
    %v1335 = vrot.slane %v1326, %v1334
    %v1338 = vmul.f32 %v1322, %v1331
    %v1339 = vmul.f32 %v1323, %v1335
    %v1340 = vmul.f32 %v1324, %v1331
    %v1341 = vmul.f32 %v1325, %v1335
    %v1342 = vadd.f32 %v1338, %v1339
    %1343 = vadd.xlane.f32.xlu0 %v1342
    %v1344 = vpop.xlane.xlu0 %1343
    %v1345 = vadd.f32 %v1340, %v1341
    %1346 = vadd.xlane.f32.xlu0 %v1345
    %v1347 = vpop.xlane.xlu0 %1346
    %v1348 = vld [vmem:[#allocation2] sm:$0x1]
    %v1350 = vlaneseq
    %v1351 = vshrl.u32 %v1350, 7
    %v1352 = vsub.s32 0, %v1351
    %v1353 = vrot.slane %v1348, %v1352
    %v1355 = vadd.f32 %v1344, %v1353
    %v1356 = vadd.f32 %v1347, %v1353
    %vm1357 = vcmask 7168
    %1358 = vst.msk [vmem:[%s7] sm:$0xff] %vm1357, %v1355
    %1359 = vst.msk [vmem:[%s7 + $0x8] sm:$0xff] %vm1357, %v1356
    // Predicated region
    $region42: #{tpu_custom_call.1} parent=1 // pred_check
      _
    $region43: #{tpu_custom_call.1} parent=1 // pred_check_branch
      %1361 = sbr.rel (0) target = $region45
    $region44: #{tpu_custom_call.1} parent=1 // pred_region
      _
    $region45: #{tpu_custom_call.1} parent=1 // pred_fallthru
      _
    // Predicated region
    $region46: #{tpu_custom_call.1} parent=1 // pred_check
      _
    $region47: #{tpu_custom_call.1} parent=1 // pred_check_branch
      %1363 = sbr.rel (0) target = $region49
    $region48: #{tpu_custom_call.1} parent=1 // pred_region
      _
    $region49: #{tpu_custom_call.1} parent=1 // pred_fallthru
      _
    %1364 = vsyncpa [#allocation4], 1
    %1365 = vsyncpa [#allocation6], 1

</llo_original>
